<compile_context>
chip_gen: v7x
topology: tpu7x:2x2x1
jax: 0.10.0
libtpu: 0.0.40
codegen_flags: <defaults>
</compile_context>

<pallas_src>
import functools

import jax
import jax.numpy as jnp
from jax import lax
from jax.experimental import pallas as pl
from jax.experimental.pallas import tpu as pltpu


def _downsample_c_kernel(x_ref, w_ref, o_ref, *, stride, cin, cout, th, w, wo,
                         h_total, mask_rows):
    # x_ref: (cin, th*stride, w)  VMEM block: input rows stride*[i*th, (i+1)*th), full width
    # w_ref: (cout, cin)          SMEM resident 1x1-conv weights
    # o_ref: (cout, th, wo)       VMEM output block (NCHW)
    th_in = th * stride
    xb = x_ref[...]                                            # (cin, th_in, w)

    if mask_rows:
        # Last H block may overrun the array when H % stride != 0; zero the
        # padded (undefined) rows so the 0/1 selection matmul stays clean.
        row0 = pl.program_id(1) * th_in
        gr = row0 + lax.broadcasted_iota(jnp.int32, (cin, th_in, w), 1)
        xb = jnp.where(gr < h_total, xb, 0)

    # ---- fused stride-s spatial subsample via one-hot selection matmuls (MXU) ----
    # Row selection: pick input rows 0, s, 2s, ... within the block.
    rh = lax.broadcasted_iota(jnp.int32, (th, th_in), 0)
    ch = lax.broadcasted_iota(jnp.int32, (th, th_in), 1)
    sel_h = (ch == rh * stride).astype(xb.dtype)               # (th, th_in)
    sel_h = jnp.broadcast_to(sel_h[None], (cin, th, th_in))
    xh = jnp.einsum('ctr,crw->ctw', sel_h, xb,
                    preferred_element_type=jnp.float32)        # (cin, th, w)

    # Column selection: pick input columns 0, s, 2s, ...
    rw = lax.broadcasted_iota(jnp.int32, (w, wo), 0)
    cw = lax.broadcasted_iota(jnp.int32, (w, wo), 1)
    sel_w = (rw == cw * stride).astype(xb.dtype)               # (w, wo)
    sel_w = jnp.broadcast_to(sel_w[None], (cin, w, wo))
    xs = jnp.einsum('ctw,cwv->ctv', xh, sel_w,
                    preferred_element_type=jnp.float32)        # (cin, th, wo)

    # ---- 1x1 conv channel mix on the VPU: cout x cin scalar-broadcast FMAs ----
    outs = []
    for co in range(cout):
        acc = xs[0] * w_ref[co, 0]
        for ci in range(1, cin):
            acc = acc + xs[ci] * w_ref[co, ci]
        outs.append(acc)                                       # (th, wo)
    o_ref[...] = jnp.stack(outs, axis=0).astype(o_ref.dtype)   # (cout, th, wo)


def downsample_c(x, weight, stride):
    """Forward of DownsampleC.

    x:      (N, Cin, H, W)    float32, NCHW (PyTorch convention)
    weight: (Cout, Cin, 1, 1) float32 (PyTorch Conv2d weight layout)
    """
    N, Cin, H, W = x.shape
    Cout = weight.shape[0]
    Ho = (H + stride - 1) // stride        # = floor((H-1)/s) + 1 (VALID 1x1 conv)
    Wo = (W + stride - 1) // stride

    wm = weight.reshape(Cout, Cin)         # (Cout, Cin) -- tiny, lives in SMEM

    # Pick the largest H tile: whole image per step if it fits a VMEM budget,
    # otherwise the largest divisor of Ho (multiple of 8 for layout) that fits.
    itemsize = jnp.dtype(x.dtype).itemsize
    budget = 4 * 1024 * 1024               # per input block (Pallas double-buffers)
    th = Ho
    if Cin * Ho * stride * W * itemsize > budget:
        for cand in range(Ho - 1, 0, -1):
            if (Ho % cand == 0 and cand % 8 == 0
                    and Cin * cand * stride * W * itemsize <= budget):
                th = cand
                break

    grid = (N, Ho // th)
    mask_rows = (H % stride) != 0

    kernel = functools.partial(
        _downsample_c_kernel, stride=stride, cin=Cin, cout=Cout,
        th=th, w=W, wo=Wo, h_total=H, mask_rows=mask_rows)

    out = pl.pallas_call(
        kernel,
        out_shape=jax.ShapeDtypeStruct((N, Cout, Ho, Wo), x.dtype),
        grid_spec=pltpu.PrefetchScalarGridSpec(
            num_scalar_prefetch=0,
            grid=grid,
            in_specs=[
                # Full-width rows of the ORIGINAL input; H offset handles the
                # block position, the kernel does the stride-s selection.
                pl.BlockSpec((None, Cin, th * stride, W),
                             lambda n, i: (n, 0, i, 0)),
                # Tiny weight matrix resident in SMEM (loaded once, no per-step DMA).
                pl.BlockSpec(memory_space=pltpu.MemorySpace.SMEM),
            ],
            out_specs=pl.BlockSpec((None, Cout, th, Wo),
                                   lambda n, i: (n, 0, i, 0)),
        ),
        compiler_params=pltpu.CompilerParams(
            dimension_semantics=("parallel", "parallel"),
        ),
    )(x, wm)
    return out


if __name__ == "__main__":
    # Module config: nIn=4, nOut=8, stride=2 (satisfies `stride != 1 or nIn != nOut`)
    nIn, nOut, stride = 4, 8, 2
    N, H, W = 2, 16, 16

    key = jax.random.PRNGKey(0)
    kx, kw = jax.random.split(key)

    x = jax.random.normal(kx, (N, nIn, H, W), dtype=jnp.float32)

    # Deterministic weight init matching PyTorch Conv2d default bound.
    bound = 1.0 / (nIn ** 0.5)
    weight = jax.random.uniform(
        kw, (nOut, nIn, 1, 1), dtype=jnp.float32, minval=-bound, maxval=bound
    )

    out = downsample_c(x, weight, stride)
    out = jax.block_until_ready(out)

    # Reference: XLA's conv.
    ref = jax.lax.conv_general_dilated(
        x, weight, window_strides=(stride, stride), padding="VALID",
        dimension_numbers=("NCHW", "OIHW", "NCHW"),
    )
    assert out.shape == ref.shape == (N, nOut, H // stride, W // stride)
    assert jnp.allclose(out, ref, atol=1e-5, rtol=1e-5)

    print("KERNEL_OK")
</pallas_src>

<mosaic_0001>
module attributes {stable_mosaic.version = 11 : i64} {
  func.func @_downsample_c_kernel(%arg0: i32, %arg1: i32, %arg2: memref<1x4x16x16xf32, #tpu.memory_space<vmem>>, %arg3: memref<8x4xf32, #tpu.memory_space<smem>>, %arg4: memref<1x8x8x8xf32, #tpu.memory_space<vmem>>) attributes {dimension_semantics = [#tpu.dimension_semantics<parallel>, #tpu.dimension_semantics<parallel>], iteration_bounds = array<i64: 2, 1>, scalar_prefetch = 0 : i64, scratch_operands = 0 : i64, tpu.core_type = #tpu.core_type<tc>, window_params = [{transform_indices = @transform_0, window_bounds = array<i64: 1, 4, 16, 16>}, {transform_indices = @transform_1, window_bounds = array<i64: 8, 4>}, {transform_indices = @transform_2, window_bounds = array<i64: 1, 8, 8, 8>}]} {
    %c0 = arith.constant 0 : index
    %c0_0 = arith.constant 0 : index
    %c0_1 = arith.constant 0 : index
    %c0_2 = arith.constant 0 : index
    %0 = vector.load %arg2[%c0, %c0_0, %c0_1, %c0_2] : memref<1x4x16x16xf32, #tpu.memory_space<vmem>>, vector<1x4x16x16xf32>
    %1 = vector.shape_cast %0 : vector<1x4x16x16xf32> to vector<4x16x16xf32>
    %2 = tpu.iota {dimensions = array<i32: 0>} : vector<8x16xi32>
    %3 = tpu.iota {dimensions = array<i32: 1>} : vector<8x16xi32>
    %c2_i32 = arith.constant 2 : i32
    %4 = vector.broadcast %c2_i32 : i32 to vector<8x16xi32>
    %5 = arith.muli %2, %4 : vector<8x16xi32>
    %6 = arith.cmpi eq, %3, %5 : vector<8x16xi32>
    %7 = arith.extui %6 : vector<8x16xi1> to vector<8x16xi32>
    %8 = arith.sitofp %7 : vector<8x16xi32> to vector<8x16xf32>
    %9 = vector.shape_cast %8 : vector<8x16xf32> to vector<1x8x16xf32>
    %10 = vector.shape_cast %9 : vector<1x8x16xf32> to vector<1x8x16xf32>
    %11 = vector.broadcast %10 : vector<1x8x16xf32> to vector<4x8x16xf32>
    "tpu.trace_start"() <{level = 10 : i32, message = "ctr,crw->ctw"}> : () -> ()
    %cst = arith.constant dense<0.000000e+00> : vector<4x8x16xf32>
    %12 = tpu.matmul %11, %1, %cst {dimension_numbers = #tpu.dot_dimension_numbers<[2], [1], [1], [2], [0, 0, 0, 1, 1, 2], [0], [0]>} : vector<4x8x16xf32>, vector<4x16x16xf32>, vector<4x8x16xf32> -> vector<4x8x16xf32>
    "tpu.trace_stop"() : () -> ()
    %13 = tpu.iota {dimensions = array<i32: 0>} : vector<16x8xi32>
    %14 = tpu.iota {dimensions = array<i32: 1>} : vector<16x8xi32>
    %c2_i32_3 = arith.constant 2 : i32
    %15 = vector.broadcast %c2_i32_3 : i32 to vector<16x8xi32>
    %16 = arith.muli %14, %15 : vector<16x8xi32>
    %17 = arith.cmpi eq, %13, %16 : vector<16x8xi32>
    %18 = arith.extui %17 : vector<16x8xi1> to vector<16x8xi32>
    %19 = arith.sitofp %18 : vector<16x8xi32> to vector<16x8xf32>
    %20 = vector.shape_cast %19 : vector<16x8xf32> to vector<1x16x8xf32>
    %21 = vector.shape_cast %20 : vector<1x16x8xf32> to vector<1x16x8xf32>
    %22 = vector.broadcast %21 : vector<1x16x8xf32> to vector<4x16x8xf32>
    "tpu.trace_start"() <{level = 10 : i32, message = "ctw,cwv->ctv"}> : () -> ()
    %cst_4 = arith.constant dense<0.000000e+00> : vector<4x8x8xf32>
    %23 = tpu.matmul %12, %22, %cst_4 {dimension_numbers = #tpu.dot_dimension_numbers<[2], [1], [1], [2], [0, 0, 0, 1, 1, 2], [0], [0]>} : vector<4x8x16xf32>, vector<4x16x8xf32>, vector<4x8x8xf32> -> vector<4x8x8xf32>
    "tpu.trace_stop"() : () -> ()
    %24 = vector.extract_strided_slice %23 {offsets = [0, 0, 0], sizes = [1, 8, 8], strides = [1, 1, 1]} : vector<4x8x8xf32> to vector<1x8x8xf32>
    %25 = vector.shape_cast %24 : vector<1x8x8xf32> to vector<8x8xf32>
    %c0_5 = arith.constant 0 : index
    %c0_6 = arith.constant 0 : index
    %26 = memref.load %arg3[%c0_5, %c0_6] : memref<8x4xf32, #tpu.memory_space<smem>>
    %27 = vector.broadcast %26 : f32 to vector<8x8xf32>
    %28 = arith.mulf %25, %27 : vector<8x8xf32>
    %29 = vector.extract_strided_slice %23 {offsets = [1, 0, 0], sizes = [1, 8, 8], strides = [1, 1, 1]} : vector<4x8x8xf32> to vector<1x8x8xf32>
    %30 = vector.shape_cast %29 : vector<1x8x8xf32> to vector<8x8xf32>
    %c0_7 = arith.constant 0 : index
    %c1 = arith.constant 1 : index
    %31 = memref.load %arg3[%c0_7, %c1] : memref<8x4xf32, #tpu.memory_space<smem>>
    %32 = vector.broadcast %31 : f32 to vector<8x8xf32>
    %33 = arith.mulf %30, %32 : vector<8x8xf32>
    %34 = arith.addf %28, %33 : vector<8x8xf32>
    %35 = vector.extract_strided_slice %23 {offsets = [2, 0, 0], sizes = [1, 8, 8], strides = [1, 1, 1]} : vector<4x8x8xf32> to vector<1x8x8xf32>
    %36 = vector.shape_cast %35 : vector<1x8x8xf32> to vector<8x8xf32>
    %c0_8 = arith.constant 0 : index
    %c2 = arith.constant 2 : index
    %37 = memref.load %arg3[%c0_8, %c2] : memref<8x4xf32, #tpu.memory_space<smem>>
    %38 = vector.broadcast %37 : f32 to vector<8x8xf32>
    %39 = arith.mulf %36, %38 : vector<8x8xf32>
    %40 = arith.addf %34, %39 : vector<8x8xf32>
    %41 = vector.extract_strided_slice %23 {offsets = [3, 0, 0], sizes = [1, 8, 8], strides = [1, 1, 1]} : vector<4x8x8xf32> to vector<1x8x8xf32>
    %42 = vector.shape_cast %41 : vector<1x8x8xf32> to vector<8x8xf32>
    %c0_9 = arith.constant 0 : index
    %c3 = arith.constant 3 : index
    %43 = memref.load %arg3[%c0_9, %c3] : memref<8x4xf32, #tpu.memory_space<smem>>
    %44 = vector.broadcast %43 : f32 to vector<8x8xf32>
    %45 = arith.mulf %42, %44 : vector<8x8xf32>
    %46 = arith.addf %40, %45 : vector<8x8xf32>
    %47 = vector.extract_strided_slice %23 {offsets = [0, 0, 0], sizes = [1, 8, 8], strides = [1, 1, 1]} : vector<4x8x8xf32> to vector<1x8x8xf32>
    %48 = vector.shape_cast %47 : vector<1x8x8xf32> to vector<8x8xf32>
    %c1_10 = arith.constant 1 : index
    %c0_11 = arith.constant 0 : index
    %49 = memref.load %arg3[%c1_10, %c0_11] : memref<8x4xf32, #tpu.memory_space<smem>>
    %50 = vector.broadcast %49 : f32 to vector<8x8xf32>
    %51 = arith.mulf %48, %50 : vector<8x8xf32>
    %52 = vector.extract_strided_slice %23 {offsets = [1, 0, 0], sizes = [1, 8, 8], strides = [1, 1, 1]} : vector<4x8x8xf32> to vector<1x8x8xf32>
    %53 = vector.shape_cast %52 : vector<1x8x8xf32> to vector<8x8xf32>
    %c1_12 = arith.constant 1 : index
    %c1_13 = arith.constant 1 : index
    %54 = memref.load %arg3[%c1_12, %c1_13] : memref<8x4xf32, #tpu.memory_space<smem>>
    %55 = vector.broadcast %54 : f32 to vector<8x8xf32>
    %56 = arith.mulf %53, %55 : vector<8x8xf32>
    %57 = arith.addf %51, %56 : vector<8x8xf32>
    %58 = vector.extract_strided_slice %23 {offsets = [2, 0, 0], sizes = [1, 8, 8], strides = [1, 1, 1]} : vector<4x8x8xf32> to vector<1x8x8xf32>
    %59 = vector.shape_cast %58 : vector<1x8x8xf32> to vector<8x8xf32>
    %c1_14 = arith.constant 1 : index
    %c2_15 = arith.constant 2 : index
    %60 = memref.load %arg3[%c1_14, %c2_15] : memref<8x4xf32, #tpu.memory_space<smem>>
    %61 = vector.broadcast %60 : f32 to vector<8x8xf32>
    %62 = arith.mulf %59, %61 : vector<8x8xf32>
    %63 = arith.addf %57, %62 : vector<8x8xf32>
    %64 = vector.extract_strided_slice %23 {offsets = [3, 0, 0], sizes = [1, 8, 8], strides = [1, 1, 1]} : vector<4x8x8xf32> to vector<1x8x8xf32>
    %65 = vector.shape_cast %64 : vector<1x8x8xf32> to vector<8x8xf32>
    %c1_16 = arith.constant 1 : index
    %c3_17 = arith.constant 3 : index
    %66 = memref.load %arg3[%c1_16, %c3_17] : memref<8x4xf32, #tpu.memory_space<smem>>
    %67 = vector.broadcast %66 : f32 to vector<8x8xf32>
    %68 = arith.mulf %65, %67 : vector<8x8xf32>
    %69 = arith.addf %63, %68 : vector<8x8xf32>
    %70 = vector.extract_strided_slice %23 {offsets = [0, 0, 0], sizes = [1, 8, 8], strides = [1, 1, 1]} : vector<4x8x8xf32> to vector<1x8x8xf32>
    %71 = vector.shape_cast %70 : vector<1x8x8xf32> to vector<8x8xf32>
    %c2_18 = arith.constant 2 : index
    %c0_19 = arith.constant 0 : index
    %72 = memref.load %arg3[%c2_18, %c0_19] : memref<8x4xf32, #tpu.memory_space<smem>>
    %73 = vector.broadcast %72 : f32 to vector<8x8xf32>
    %74 = arith.mulf %71, %73 : vector<8x8xf32>
    %75 = vector.extract_strided_slice %23 {offsets = [1, 0, 0], sizes = [1, 8, 8], strides = [1, 1, 1]} : vector<4x8x8xf32> to vector<1x8x8xf32>
    %76 = vector.shape_cast %75 : vector<1x8x8xf32> to vector<8x8xf32>
    %c2_20 = arith.constant 2 : index
    %c1_21 = arith.constant 1 : index
    %77 = memref.load %arg3[%c2_20, %c1_21] : memref<8x4xf32, #tpu.memory_space<smem>>
    %78 = vector.broadcast %77 : f32 to vector<8x8xf32>
    %79 = arith.mulf %76, %78 : vector<8x8xf32>
    %80 = arith.addf %74, %79 : vector<8x8xf32>
    %81 = vector.extract_strided_slice %23 {offsets = [2, 0, 0], sizes = [1, 8, 8], strides = [1, 1, 1]} : vector<4x8x8xf32> to vector<1x8x8xf32>
    %82 = vector.shape_cast %81 : vector<1x8x8xf32> to vector<8x8xf32>
    %c2_22 = arith.constant 2 : index
    %c2_23 = arith.constant 2 : index
    %83 = memref.load %arg3[%c2_22, %c2_23] : memref<8x4xf32, #tpu.memory_space<smem>>
    %84 = vector.broadcast %83 : f32 to vector<8x8xf32>
    %85 = arith.mulf %82, %84 : vector<8x8xf32>
    %86 = arith.addf %80, %85 : vector<8x8xf32>
    %87 = vector.extract_strided_slice %23 {offsets = [3, 0, 0], sizes = [1, 8, 8], strides = [1, 1, 1]} : vector<4x8x8xf32> to vector<1x8x8xf32>
    %88 = vector.shape_cast %87 : vector<1x8x8xf32> to vector<8x8xf32>
    %c2_24 = arith.constant 2 : index
    %c3_25 = arith.constant 3 : index
    %89 = memref.load %arg3[%c2_24, %c3_25] : memref<8x4xf32, #tpu.memory_space<smem>>
    %90 = vector.broadcast %89 : f32 to vector<8x8xf32>
    %91 = arith.mulf %88, %90 : vector<8x8xf32>
    %92 = arith.addf %86, %91 : vector<8x8xf32>
    %93 = vector.extract_strided_slice %23 {offsets = [0, 0, 0], sizes = [1, 8, 8], strides = [1, 1, 1]} : vector<4x8x8xf32> to vector<1x8x8xf32>
    %94 = vector.shape_cast %93 : vector<1x8x8xf32> to vector<8x8xf32>
    %c3_26 = arith.constant 3 : index
    %c0_27 = arith.constant 0 : index
    %95 = memref.load %arg3[%c3_26, %c0_27] : memref<8x4xf32, #tpu.memory_space<smem>>
    %96 = vector.broadcast %95 : f32 to vector<8x8xf32>
    %97 = arith.mulf %94, %96 : vector<8x8xf32>
    %98 = vector.extract_strided_slice %23 {offsets = [1, 0, 0], sizes = [1, 8, 8], strides = [1, 1, 1]} : vector<4x8x8xf32> to vector<1x8x8xf32>
    %99 = vector.shape_cast %98 : vector<1x8x8xf32> to vector<8x8xf32>
    %c3_28 = arith.constant 3 : index
    %c1_29 = arith.constant 1 : index
    %100 = memref.load %arg3[%c3_28, %c1_29] : memref<8x4xf32, #tpu.memory_space<smem>>
    %101 = vector.broadcast %100 : f32 to vector<8x8xf32>
    %102 = arith.mulf %99, %101 : vector<8x8xf32>
    %103 = arith.addf %97, %102 : vector<8x8xf32>
    %104 = vector.extract_strided_slice %23 {offsets = [2, 0, 0], sizes = [1, 8, 8], strides = [1, 1, 1]} : vector<4x8x8xf32> to vector<1x8x8xf32>
    %105 = vector.shape_cast %104 : vector<1x8x8xf32> to vector<8x8xf32>
    %c3_30 = arith.constant 3 : index
    %c2_31 = arith.constant 2 : index
    %106 = memref.load %arg3[%c3_30, %c2_31] : memref<8x4xf32, #tpu.memory_space<smem>>
    %107 = vector.broadcast %106 : f32 to vector<8x8xf32>
    %108 = arith.mulf %105, %107 : vector<8x8xf32>
    %109 = arith.addf %103, %108 : vector<8x8xf32>
    %110 = vector.extract_strided_slice %23 {offsets = [3, 0, 0], sizes = [1, 8, 8], strides = [1, 1, 1]} : vector<4x8x8xf32> to vector<1x8x8xf32>
    %111 = vector.shape_cast %110 : vector<1x8x8xf32> to vector<8x8xf32>
    %c3_32 = arith.constant 3 : index
    %c3_33 = arith.constant 3 : index
    %112 = memref.load %arg3[%c3_32, %c3_33] : memref<8x4xf32, #tpu.memory_space<smem>>
    %113 = vector.broadcast %112 : f32 to vector<8x8xf32>
    %114 = arith.mulf %111, %113 : vector<8x8xf32>
    %115 = arith.addf %109, %114 : vector<8x8xf32>
    %116 = vector.extract_strided_slice %23 {offsets = [0, 0, 0], sizes = [1, 8, 8], strides = [1, 1, 1]} : vector<4x8x8xf32> to vector<1x8x8xf32>
    %117 = vector.shape_cast %116 : vector<1x8x8xf32> to vector<8x8xf32>
    %c4 = arith.constant 4 : index
    %c0_34 = arith.constant 0 : index
    %118 = memref.load %arg3[%c4, %c0_34] : memref<8x4xf32, #tpu.memory_space<smem>>
    %119 = vector.broadcast %118 : f32 to vector<8x8xf32>
    %120 = arith.mulf %117, %119 : vector<8x8xf32>
    %121 = vector.extract_strided_slice %23 {offsets = [1, 0, 0], sizes = [1, 8, 8], strides = [1, 1, 1]} : vector<4x8x8xf32> to vector<1x8x8xf32>
    %122 = vector.shape_cast %121 : vector<1x8x8xf32> to vector<8x8xf32>
    %c4_35 = arith.constant 4 : index
    %c1_36 = arith.constant 1 : index
    %123 = memref.load %arg3[%c4_35, %c1_36] : memref<8x4xf32, #tpu.memory_space<smem>>
    %124 = vector.broadcast %123 : f32 to vector<8x8xf32>
    %125 = arith.mulf %122, %124 : vector<8x8xf32>
    %126 = arith.addf %120, %125 : vector<8x8xf32>
    %127 = vector.extract_strided_slice %23 {offsets = [2, 0, 0], sizes = [1, 8, 8], strides = [1, 1, 1]} : vector<4x8x8xf32> to vector<1x8x8xf32>
    %128 = vector.shape_cast %127 : vector<1x8x8xf32> to vector<8x8xf32>
    %c4_37 = arith.constant 4 : index
    %c2_38 = arith.constant 2 : index
    %129 = memref.load %arg3[%c4_37, %c2_38] : memref<8x4xf32, #tpu.memory_space<smem>>
    %130 = vector.broadcast %129 : f32 to vector<8x8xf32>
    %131 = arith.mulf %128, %130 : vector<8x8xf32>
    %132 = arith.addf %126, %131 : vector<8x8xf32>
    %133 = vector.extract_strided_slice %23 {offsets = [3, 0, 0], sizes = [1, 8, 8], strides = [1, 1, 1]} : vector<4x8x8xf32> to vector<1x8x8xf32>
    %134 = vector.shape_cast %133 : vector<1x8x8xf32> to vector<8x8xf32>
    %c4_39 = arith.constant 4 : index
    %c3_40 = arith.constant 3 : index
    %135 = memref.load %arg3[%c4_39, %c3_40] : memref<8x4xf32, #tpu.memory_space<smem>>
    %136 = vector.broadcast %135 : f32 to vector<8x8xf32>
    %137 = arith.mulf %134, %136 : vector<8x8xf32>
    %138 = arith.addf %132, %137 : vector<8x8xf32>
    %139 = vector.extract_strided_slice %23 {offsets = [0, 0, 0], sizes = [1, 8, 8], strides = [1, 1, 1]} : vector<4x8x8xf32> to vector<1x8x8xf32>
    %140 = vector.shape_cast %139 : vector<1x8x8xf32> to vector<8x8xf32>
    %c5 = arith.constant 5 : index
    %c0_41 = arith.constant 0 : index
    %141 = memref.load %arg3[%c5, %c0_41] : memref<8x4xf32, #tpu.memory_space<smem>>
    %142 = vector.broadcast %141 : f32 to vector<8x8xf32>
    %143 = arith.mulf %140, %142 : vector<8x8xf32>
    %144 = vector.extract_strided_slice %23 {offsets = [1, 0, 0], sizes = [1, 8, 8], strides = [1, 1, 1]} : vector<4x8x8xf32> to vector<1x8x8xf32>
    %145 = vector.shape_cast %144 : vector<1x8x8xf32> to vector<8x8xf32>
    %c5_42 = arith.constant 5 : index
    %c1_43 = arith.constant 1 : index
    %146 = memref.load %arg3[%c5_42, %c1_43] : memref<8x4xf32, #tpu.memory_space<smem>>
    %147 = vector.broadcast %146 : f32 to vector<8x8xf32>
    %148 = arith.mulf %145, %147 : vector<8x8xf32>
    %149 = arith.addf %143, %148 : vector<8x8xf32>
    %150 = vector.extract_strided_slice %23 {offsets = [2, 0, 0], sizes = [1, 8, 8], strides = [1, 1, 1]} : vector<4x8x8xf32> to vector<1x8x8xf32>
    %151 = vector.shape_cast %150 : vector<1x8x8xf32> to vector<8x8xf32>
    %c5_44 = arith.constant 5 : index
    %c2_45 = arith.constant 2 : index
    %152 = memref.load %arg3[%c5_44, %c2_45] : memref<8x4xf32, #tpu.memory_space<smem>>
    %153 = vector.broadcast %152 : f32 to vector<8x8xf32>
    %154 = arith.mulf %151, %153 : vector<8x8xf32>
    %155 = arith.addf %149, %154 : vector<8x8xf32>
    %156 = vector.extract_strided_slice %23 {offsets = [3, 0, 0], sizes = [1, 8, 8], strides = [1, 1, 1]} : vector<4x8x8xf32> to vector<1x8x8xf32>
    %157 = vector.shape_cast %156 : vector<1x8x8xf32> to vector<8x8xf32>
    %c5_46 = arith.constant 5 : index
    %c3_47 = arith.constant 3 : index
    %158 = memref.load %arg3[%c5_46, %c3_47] : memref<8x4xf32, #tpu.memory_space<smem>>
    %159 = vector.broadcast %158 : f32 to vector<8x8xf32>
    %160 = arith.mulf %157, %159 : vector<8x8xf32>
    %161 = arith.addf %155, %160 : vector<8x8xf32>
    %162 = vector.extract_strided_slice %23 {offsets = [0, 0, 0], sizes = [1, 8, 8], strides = [1, 1, 1]} : vector<4x8x8xf32> to vector<1x8x8xf32>
    %163 = vector.shape_cast %162 : vector<1x8x8xf32> to vector<8x8xf32>
    %c6 = arith.constant 6 : index
    %c0_48 = arith.constant 0 : index
    %164 = memref.load %arg3[%c6, %c0_48] : memref<8x4xf32, #tpu.memory_space<smem>>
    %165 = vector.broadcast %164 : f32 to vector<8x8xf32>
    %166 = arith.mulf %163, %165 : vector<8x8xf32>
    %167 = vector.extract_strided_slice %23 {offsets = [1, 0, 0], sizes = [1, 8, 8], strides = [1, 1, 1]} : vector<4x8x8xf32> to vector<1x8x8xf32>
    %168 = vector.shape_cast %167 : vector<1x8x8xf32> to vector<8x8xf32>
    %c6_49 = arith.constant 6 : index
    %c1_50 = arith.constant 1 : index
    %169 = memref.load %arg3[%c6_49, %c1_50] : memref<8x4xf32, #tpu.memory_space<smem>>
    %170 = vector.broadcast %169 : f32 to vector<8x8xf32>
    %171 = arith.mulf %168, %170 : vector<8x8xf32>
    %172 = arith.addf %166, %171 : vector<8x8xf32>
    %173 = vector.extract_strided_slice %23 {offsets = [2, 0, 0], sizes = [1, 8, 8], strides = [1, 1, 1]} : vector<4x8x8xf32> to vector<1x8x8xf32>
    %174 = vector.shape_cast %173 : vector<1x8x8xf32> to vector<8x8xf32>
    %c6_51 = arith.constant 6 : index
    %c2_52 = arith.constant 2 : index
    %175 = memref.load %arg3[%c6_51, %c2_52] : memref<8x4xf32, #tpu.memory_space<smem>>
    %176 = vector.broadcast %175 : f32 to vector<8x8xf32>
    %177 = arith.mulf %174, %176 : vector<8x8xf32>
    %178 = arith.addf %172, %177 : vector<8x8xf32>
    %179 = vector.extract_strided_slice %23 {offsets = [3, 0, 0], sizes = [1, 8, 8], strides = [1, 1, 1]} : vector<4x8x8xf32> to vector<1x8x8xf32>
    %180 = vector.shape_cast %179 : vector<1x8x8xf32> to vector<8x8xf32>
    %c6_53 = arith.constant 6 : index
    %c3_54 = arith.constant 3 : index
    %181 = memref.load %arg3[%c6_53, %c3_54] : memref<8x4xf32, #tpu.memory_space<smem>>
    %182 = vector.broadcast %181 : f32 to vector<8x8xf32>
    %183 = arith.mulf %180, %182 : vector<8x8xf32>
    %184 = arith.addf %178, %183 : vector<8x8xf32>
    %185 = vector.extract_strided_slice %23 {offsets = [0, 0, 0], sizes = [1, 8, 8], strides = [1, 1, 1]} : vector<4x8x8xf32> to vector<1x8x8xf32>
    %186 = vector.shape_cast %185 : vector<1x8x8xf32> to vector<8x8xf32>
    %c7 = arith.constant 7 : index
    %c0_55 = arith.constant 0 : index
    %187 = memref.load %arg3[%c7, %c0_55] : memref<8x4xf32, #tpu.memory_space<smem>>
    %188 = vector.broadcast %187 : f32 to vector<8x8xf32>
    %189 = arith.mulf %186, %188 : vector<8x8xf32>
    %190 = vector.extract_strided_slice %23 {offsets = [1, 0, 0], sizes = [1, 8, 8], strides = [1, 1, 1]} : vector<4x8x8xf32> to vector<1x8x8xf32>
    %191 = vector.shape_cast %190 : vector<1x8x8xf32> to vector<8x8xf32>
    %c7_56 = arith.constant 7 : index
    %c1_57 = arith.constant 1 : index
    %192 = memref.load %arg3[%c7_56, %c1_57] : memref<8x4xf32, #tpu.memory_space<smem>>
    %193 = vector.broadcast %192 : f32 to vector<8x8xf32>
    %194 = arith.mulf %191, %193 : vector<8x8xf32>
    %195 = arith.addf %189, %194 : vector<8x8xf32>
    %196 = vector.extract_strided_slice %23 {offsets = [2, 0, 0], sizes = [1, 8, 8], strides = [1, 1, 1]} : vector<4x8x8xf32> to vector<1x8x8xf32>
    %197 = vector.shape_cast %196 : vector<1x8x8xf32> to vector<8x8xf32>
    %c7_58 = arith.constant 7 : index
    %c2_59 = arith.constant 2 : index
    %198 = memref.load %arg3[%c7_58, %c2_59] : memref<8x4xf32, #tpu.memory_space<smem>>
    %199 = vector.broadcast %198 : f32 to vector<8x8xf32>
    %200 = arith.mulf %197, %199 : vector<8x8xf32>
    %201 = arith.addf %195, %200 : vector<8x8xf32>
    %202 = vector.extract_strided_slice %23 {offsets = [3, 0, 0], sizes = [1, 8, 8], strides = [1, 1, 1]} : vector<4x8x8xf32> to vector<1x8x8xf32>
    %203 = vector.shape_cast %202 : vector<1x8x8xf32> to vector<8x8xf32>
    %c7_60 = arith.constant 7 : index
    %c3_61 = arith.constant 3 : index
    %204 = memref.load %arg3[%c7_60, %c3_61] : memref<8x4xf32, #tpu.memory_space<smem>>
    %205 = vector.broadcast %204 : f32 to vector<8x8xf32>
    %206 = arith.mulf %203, %205 : vector<8x8xf32>
    %207 = arith.addf %201, %206 : vector<8x8xf32>
    %208 = vector.shape_cast %46 : vector<8x8xf32> to vector<1x8x8xf32>
    %209 = vector.shape_cast %69 : vector<8x8xf32> to vector<1x8x8xf32>
    %210 = vector.shape_cast %92 : vector<8x8xf32> to vector<1x8x8xf32>
    %211 = vector.shape_cast %115 : vector<8x8xf32> to vector<1x8x8xf32>
    %212 = vector.shape_cast %138 : vector<8x8xf32> to vector<1x8x8xf32>
    %213 = vector.shape_cast %161 : vector<8x8xf32> to vector<1x8x8xf32>
    %214 = vector.shape_cast %184 : vector<8x8xf32> to vector<1x8x8xf32>
    %215 = vector.shape_cast %207 : vector<8x8xf32> to vector<1x8x8xf32>
    %216 = tpu.concatenate %208, %209, %210, %211, %212, %213, %214, %215 in 0 : vector<1x8x8xf32>, vector<1x8x8xf32>, vector<1x8x8xf32>, vector<1x8x8xf32>, vector<1x8x8xf32>, vector<1x8x8xf32>, vector<1x8x8xf32>, vector<1x8x8xf32> -> vector<8x8x8xf32>
    %c0_62 = arith.constant 0 : index
    %c0_63 = arith.constant 0 : index
    %c0_64 = arith.constant 0 : index
    %c0_65 = arith.constant 0 : index
    %217 = vector.load %arg4[%c0_62, %c0_63, %c0_64, %c0_65] : memref<1x8x8x8xf32, #tpu.memory_space<vmem>>, vector<1x8x8x8xf32>
    %218 = vector.shape_cast %217 : vector<1x8x8x8xf32> to vector<8x8x8xf32>
    %219 = vector.shape_cast %216 : vector<8x8x8xf32> to vector<1x8x8x8xf32>
    tpu.vector_store %arg4[%c0_62, %c0_63, %c0_64, %c0_65], %219 {strides = array<i32>} : memref<1x8x8x8xf32, #tpu.memory_space<vmem>>, vector<1x8x8x8xf32>,
    return
  }
  func.func @transform_0(%arg0: i32, %arg1: i32) -> (i32, i32, i32, i32) {
    %c0_i32 = arith.constant 0 : i32
    %c0_i32_0 = arith.constant 0 : i32
    %c0_i32_1 = arith.constant 0 : i32
    return %arg0, %c0_i32, %arg1, %c0_i32_0 : i32, i32, i32, i32
  }
  func.func @transform_1(%arg0: i32, %arg1: i32) -> (i32, i32) {
    %c0_i32 = arith.constant 0 : i32
    %c0_i32_0 = arith.constant 0 : i32
    %c0_i32_1 = arith.constant 0 : i32
    return %c0_i32, %c0_i32_0 : i32, i32
  }
  func.func @transform_2(%arg0: i32, %arg1: i32) -> (i32, i32, i32, i32) {
    %c0_i32 = arith.constant 0 : i32
    %c0_i32_0 = arith.constant 0 : i32
    %c0_i32_1 = arith.constant 0 : i32
    return %arg0, %c0_i32, %arg1, %c0_i32_0 : i32, i32, i32, i32
  }
}

</mosaic_0001>

<llo_original>
// kernel: tpu_custom_call.1
$region0: #{tpu_custom_call.1}
  #allocation0 [shape = 'u32[]', space=smem, size = 0x4, offset = 0x4, fixed_abs, tag = 'smem constant byte address 0x4 - core index']
  #allocation1 [shape = 'u32[144,128]{1,0:T(1,128)}', space=vmem, size = 0x12000, scoped, tag = 'internal scratch']
  %s0 = inlined_call_operand.hbm [shape: f32[2,4,16,16], index: 0, kind: input, shape index: {}]
  %s1 = inlined_call_operand.vmem [shape: f32[8,4], index: 1, kind: input, shape index: {}]
  %s2 = inlined_call_operand.hbm [shape: f32[2,8,8,8], index: 2, kind: output, shape index: {}]
  %s3 = sld [smem:[#allocation0]]
  $region49: #{tpu_custom_call.1} parent=0
    _
  %s5 = ssub.s32 1, %s3
  %s6 = scalar_select 0, %s5, %s3
  $region1: #{tpu_custom_call.1} parent=0
    #allocation2 [shape = 'u8[65536]{0}', space=vmem, size = 0x10000, scoped, tag = 'input window, operand 0']
    #allocation3 [shape = 's32[2]{0}', space=sflag, size = 0x8, scoped, tag = 'scoped memory for tpu_custom_call.1']
    #allocation4 [shape = 's32[2]{0}', space=sflag, size = 0x8, scoped, tag = 'scoped memory for tpu_custom_call.1']
    #allocation5 [shape = 's32[2]{0}', space=sflag, size = 0x8, scoped, tag = 'scoped memory for tpu_custom_call.1']
    #allocation6 [shape = 'u8[4096]{0}', space=smem, size = 0x1000, scoped, tag = 'input window, operand 1, single buffered']
    #allocation7 [shape = 'u8[65536]{0}', space=vmem, size = 0x10000, scoped, tag = 'output window, operand 0']
    %7 = vsyncpa [#allocation3], 0
    %s8 = scalar_lea.sflag [#allocation3], 1
    %9 = vsyncpa %s8, 0
    %10 = vsyncpa [#allocation5], 0
    %11 = vsyncpa [#allocation4], 0
    %s12 = scalar_lea.sflag [#allocation4], 1
    %13 = vsyncpa %s12, 0
    loop: start=0, step=1, limit=4
    $region2: #{tpu_custom_call.1} parent=1 // loop_pre_header
      _
    $region3: #{tpu_custom_call.1} parent=1 // loop_header
      %s15 = sphi 0, %s19
      %p16 = scmp.ge.s32.totalorder %s15, 4
      %s22 = sphi 0, %s34
      %s23 = sphi 0, %s30
      %s24 = sphi 0, %s22
      %s25 = sphi 0, %s23
      %s26 = sphi 0, %s24
      %s27 = sphi 0, %s25
      %s39 = sphi 0, %s41
      %s42 = sphi 0, %s39
      %s43 = sphi 0, %s42
      %s59 = sphi 0, %s43
      %s63 = sphi 0, %s63
      %s65 = sphi 0, %s63
      %s66 = sphi 0, %s65
      %s80 = sphi 0, %s66
      %s88 = sphi 0, %s90
      %s91 = sphi 0, %s88
      %s92 = sphi 0, %s91
      %s108 = sphi 0, %s92
    $region4: #{tpu_custom_call.1} parent=1 // loop_header_branch
      %18 = sbr.rel (%p16) target = $region8
    $region5: #{tpu_custom_call.1} parent=1 // loop_body
      %s20 = ssub.s32 %s15, 1
      %s21 = ssub.s32 %s15, 2
      %s28 = sadd.s32 1, %s23
      %p29 = scmp.ge.s32.totalorder %s28, 1
      %s30 = scalar_select %p29, 0, %s28
      %s31 = sadd.s32 1, %s22
      %s32 = scalar_select %p29, %s31, %s22
      %p33 = scmp.ge.s32.totalorder %s32, 2
      %s34 = scalar_select %p33, 0, %s32
      %s35 = ssub.s32 %s22, %s34
      %s36 = ssub.s32 %s23, %s30
      %s37 = sor.u32 %s35, %s36
      %p38 = scmp.eq.s32.totalorder %s37, 0
      %s40 = sadd.s32 %s39, 1
      %s41 = scalar_select %p38, %s39, %s40
      %p44 = pneg %p38
      %p45 = scmp.eq.s32.totalorder %s15, 1
      %p46 = por %p44, %p45
      %p47 = scmp.ne.s32.totalorder %s39, %s42
      %p48 = scmp.eq.s32.totalorder %s15, 0
      %p49 = por %p47, %p48
      %p50 = scmp.ne.s32.totalorder %s39, %s42
      %p51 = scmp.eq.s32.totalorder %s20, 1
      %p52 = por %p50, %p51
      %p53 = scmp.ne.s32.totalorder %s42, %s43
      %p54 = scmp.eq.s32.totalorder %s20, 0
      %p55 = por %p53, %p54
      %p56 = scmp.ne.s32.totalorder %s42, %s43
      %p57 = scmp.eq.s32.totalorder %s21, 1
      %p58 = por %p56, %p57
      %p60 = scmp.ne.s32.totalorder %s43, %s59
      %p61 = scmp.eq.s32.totalorder %s21, 0
      %p62 = por %p60, %p61
      %s64 = sadd.s32 %s63, 1
      %p67 = scmp.eq.s32.totalorder %s15, 1
      %p68 = scmp.ne.s32.totalorder %s63, %s65
      %p69 = scmp.eq.s32.totalorder %s15, 0
      %p70 = por %p68, %p69
      %p71 = scmp.ne.s32.totalorder %s63, %s65
      %p72 = scmp.eq.s32.totalorder %s20, 1
      %p73 = por %p71, %p72
      %p74 = scmp.ne.s32.totalorder %s65, %s66
      %p75 = scmp.eq.s32.totalorder %s20, 0
      %p76 = por %p74, %p75
      %p77 = scmp.ne.s32.totalorder %s65, %s66
      %p78 = scmp.eq.s32.totalorder %s21, 1
      %p79 = por %p77, %p78
      %p81 = scmp.ne.s32.totalorder %s66, %s80
      %p82 = scmp.eq.s32.totalorder %s21, 0
      %p83 = por %p81, %p82
      %s84 = ssub.s32 %s22, %s34
      %s85 = ssub.s32 %s23, %s30
      %s86 = sor.u32 %s84, %s85
      %p87 = scmp.eq.s32.totalorder %s86, 0
      %s89 = sadd.s32 %s88, 1
      %s90 = scalar_select %p87, %s88, %s89
      %p93 = pneg %p87
      %p94 = scmp.eq.s32.totalorder %s15, 1
      %p95 = por %p93, %p94
      %p96 = scmp.ne.s32.totalorder %s88, %s91
      %p97 = scmp.eq.s32.totalorder %s15, 0
      %p98 = por %p96, %p97
      %p99 = scmp.ne.s32.totalorder %s88, %s91
      %p100 = scmp.eq.s32.totalorder %s20, 1
      %p101 = por %p99, %p100
      %p102 = scmp.ne.s32.totalorder %s91, %s92
      %p103 = scmp.eq.s32.totalorder %s20, 0
      %p104 = por %p102, %p103
      %p105 = scmp.ne.s32.totalorder %s91, %s92
      %p106 = scmp.eq.s32.totalorder %s21, 1
      %p107 = por %p105, %p106
      %p109 = scmp.ne.s32.totalorder %s92, %s108
      %p110 = scmp.eq.s32.totalorder %s21, 0
      %p111 = por %p109, %p110
      %p112 = scmp.le.s32.totalorder 1, %s15
      %p113 = scmp.lt.s32.totalorder %s15, 3
      %p114 = pnand %p112, %p113
      %p115 = pneg %p114
      // Predicated region
      $region9: #{tpu_custom_call.1} parent=5 // pred_check
        _
      $region10: #{tpu_custom_call.1} parent=5 // pred_check_branch
        %117 = sbr.rel (%p114) target = $region12
      $region11: #{tpu_custom_call.1} parent=5 // pred_region
        %s118 = ssub.s32 %s15, 1
        // Predicated region
        $region13: #{tpu_custom_call.1} parent=11 // pred_check
          %p119 = pneg %p76
        $region14: #{tpu_custom_call.1} parent=11 // pred_check_branch
          %121 = sbr.rel (%p119) target = $region16
        $region15: #{tpu_custom_call.1} parent=11 // pred_region
          %s123 = ssub.s32 128, 128
          %124 = vsyncadd [#allocation5], %s123
          %s126 = sshll.u32 %s1, 4
          %s127 = int_to_ptr.vmem [resolvable:$true] %s126
          %129 = dma.vmem_to_smem %s127, 128, [#allocation6], [#allocation5]
        $region16: #{tpu_custom_call.1} parent=11 // pred_fallthru
          _
      $region12: #{tpu_custom_call.1} parent=5 // pred_fallthru
        _
      %p130 = scmp.lt.s32.totalorder %s15, 2
      // Predicated region
      $region17: #{tpu_custom_call.1} parent=5 // pred_check
        %p131 = pneg %p130
      $region18: #{tpu_custom_call.1} parent=5 // pred_check_branch
        %133 = sbr.rel (%p131) target = $region20
      $region19: #{tpu_custom_call.1} parent=5 // pred_region
        // Predicated region
        $region21: #{tpu_custom_call.1} parent=19 // pred_check
          %p134 = pneg %p49
        $region22: #{tpu_custom_call.1} parent=19 // pred_check_branch
          %136 = sbr.rel (%p134) target = $region24
        $region23: #{tpu_custom_call.1} parent=19 // pred_region
          %s137 = sand.u32 %s39, 1
          %s138 = scalar_lea.sflag [#allocation3], %s137
          %s139 = sand.u32 %s39, 1
          %s140 = smul.addr %s139, 64
          %s141 = scalar_lea.vmem [#allocation2], %s140
          %s142 = smul.u32 2, %s23
          %s144 = ssub.s32 1024, 1024
          %145 = vsyncadd %s138, %s144
          %s146 = smul.addr %s22, 8
          %s147 = sadd.s32 %s142, %s146
          %s148 = smul.addr %s147, 128
          %s149 = scalar_lea.hbm %s0, %s148
          %s150 = sshll.u32 %s141, 4
          %s151 = int_to_ptr.vmem [resolvable:$true] %s150
          %156 = dma.hbm_to_vmem [thread:$0]  %s149, 1024, %s151, %s138, 128, 128, 8
        $region24: #{tpu_custom_call.1} parent=19 // pred_fallthru
          _
      $region20: #{tpu_custom_call.1} parent=5 // pred_fallthru
        _
      %p157 = scmp.le.s32.totalorder 1, %s15
      %p158 = scmp.lt.s32.totalorder %s15, 3
      %p159 = pnand %p157, %p158
      %p160 = pneg %p159
      // Predicated region
      $region25: #{tpu_custom_call.1} parent=5 // pred_check
        _
      $region26: #{tpu_custom_call.1} parent=5 // pred_check_branch
        %162 = sbr.rel (%p159) target = $region28
      $region27: #{tpu_custom_call.1} parent=5 // pred_region
        %s163 = ssub.s32 %s15, 1
        %s164 = sand.u32 %s42, 1
        %s165 = scalar_lea.sflag [#allocation3], %s164
        %s166 = sand.u32 %s42, 1
        %s167 = smul.addr %s166, 64
        %s168 = scalar_lea.vmem [#allocation2], %s167
        // Predicated region
        $region29: #{tpu_custom_call.1} parent=27 // pred_check
          %p169 = pneg %p55
        $region30: #{tpu_custom_call.1} parent=27 // pred_check_branch
          %171 = sbr.rel (%p169) target = $region32
        $region31: #{tpu_custom_call.1} parent=27 // pred_region
          %172 = dma.done %s165, 1024
        $region32: #{tpu_custom_call.1} parent=27 // pred_fallthru
          _
        // Predicated region
        $region33: #{tpu_custom_call.1} parent=27 // pred_check
          %p173 = pneg %p76
        $region34: #{tpu_custom_call.1} parent=27 // pred_check_branch
          %175 = sbr.rel (%p173) target = $region36
        $region35: #{tpu_custom_call.1} parent=27 // pred_region
          %176 = dma.done [#allocation5], 128
        $region36: #{tpu_custom_call.1} parent=27 // pred_fallthru
          _
        %177 = sfence
        %s178 = sand.u32 %s42, 1
        %s179 = scalar_lea.sflag [#allocation3], %s178
        %s180 = sand.u32 %s42, 1
        %s181 = smul.addr %s180, 64
        %s182 = scalar_lea.vmem [#allocation2], %s181
        %p183 = pneg %p55
        %p184 = pneg %p52
        %p185 = pneg %p76
        %p186 = pneg %p73
        %p187 = pneg %p104
        %p188 = pneg %p101
        %s189 = sand.u32 %s91, 1
        %s190 = scalar_lea.sflag [#allocation4], %s189
        %s191 = sand.u32 %s91, 1
        %s192 = smul.addr %s191, 64
        %s193 = scalar_lea.vmem [#allocation7], %s192
        %s194 = smul.u32 2, %s25
        %v195 = vld [vmem:[%s168] sm:$0xff]
        %v196 = vld [vmem:[%s168 + $0x8] sm:$0xff]
        %v197 = vld [vmem:[%s168 + $0x10] sm:$0xff]
        %v198 = vld [vmem:[%s168 + $0x18] sm:$0xff]
        %v199 = vld [vmem:[%s168 + $0x20] sm:$0xff]
        %v200 = vld [vmem:[%s168 + $0x28] sm:$0xff]
        %v201 = vld [vmem:[%s168 + $0x30] sm:$0xff]
        %v202 = vld [vmem:[%s168 + $0x38] sm:$0xff]
        %v203 = vlaneseq
        %v204 = vshrl.u32 %v203, 7
        %v205 = vlaneseq
        %v206 = vand.u32 %v205, 127
        %v207 = vmul.u32 %v204, 2
        %vm208 = vcmp.eq.s32.totalorder %v206, %v207
        %v209 = vsel %vm208, 1, 0
        %v210 = vcvt.s32.f32 %v209
        %vm211 = vcmask 130048
        %v213 = vsel %vm211, %v210, 0
        %215 = vmatprep.subr.mxu0 0.0
        %216 = vmatpush1.msra.mxu0 %v195
        %217 = vmatprep.subr.mxu0 0.0
        %218 = vmatpush1.msra.mxu0 %v196
        %219 = vmatprep.subr.mxu0 0.0
        %220 = vmatpush1.msra.mxu0 0.0
        %221 = vmatprep.subr.mxu0 0.0
        %222 = vmatpush1.msra.mxu0 0.0
        %223 = vmatprep.subr.mxu0 0.0
        %224 = vmatpush1.msra.mxu0 0.0
        %225 = vmatprep.subr.mxu0 0.0
        %226 = vmatpush1.msra.mxu0 0.0
        %227 = vmatprep.subr.mxu0 0.0
        %228 = vmatpush1.msra.mxu0 0.0
        %229 = vmatprep.subr.mxu0 0.0
        %230 = vmatpush1.msra.mxu0 0.0
        %231 = vmatprep.subr.mxu0 0.0
        %232 = vmatpush1.msra.mxu0 0.0
        %233 = vmatprep.subr.mxu0 0.0
        %234 = vmatpush1.msra.mxu0 0.0
        %235 = vmatprep.subr.mxu0 0.0
        %236 = vmatpush1.msra.mxu0 0.0
        %237 = vmatprep.subr.mxu0 0.0
        %238 = vmatpush1.msra.mxu0 0.0
        %239 = vmatprep.subr.mxu0 0.0
        %240 = vmatpush1.msra.mxu0 0.0
        %241 = vmatprep.subr.mxu0 0.0
        %242 = vmatpush1.msra.mxu0 0.0
        %243 = vmatprep.subr.mxu0 0.0
        %244 = vmatpush1.msra.mxu0 0.0
        %245 = vmatprep.subr.mxu0 0.0
        %246 = vmatpush1.msra.mxu0 0.0
        %247 = vmatprep.subr.mxu0 0.0
        %248 = vmatpush1.msra.mxu0 0.0
        %249 = vmatprep.subr.mxu0 0.0
        %250 = vmatpush1.msra.mxu0 0.0
        %251 = vmatprep.subr.mxu0 0.0
        %252 = vmatpush1.msra.mxu0 0.0
        %253 = vmatprep.subr.mxu0 0.0
        %254 = vmatpush1.msra.mxu0 0.0
        %255 = vmatprep.subr.mxu0 0.0
        %256 = vmatpush1.msra.mxu0 0.0
        %257 = vmatprep.subr.mxu0 0.0
        %258 = vmatpush1.msra.mxu0 0.0
        %259 = vmatprep.subr.mxu0 0.0
        %260 = vmatpush1.msra.mxu0 0.0
        %261 = vmatprep.subr.mxu0 0.0
        %262 = vmatpush1.msra.mxu0 0.0
        %263 = vmatprep.subr.mxu0 0.0
        %264 = vmatpush1.msra.mxu0 0.0
        %265 = vmatprep.subr.mxu0 0.0
        %266 = vmatpush1.msra.mxu0 0.0
        %267 = vmatprep.subr.mxu0 0.0
        %268 = vmatpush1.msra.mxu0 0.0
        %269 = vmatprep.subr.mxu0 0.0
        %270 = vmatpush1.msra.mxu0 0.0
        %271 = vmatprep.subr.mxu0 0.0
        %272 = vmatpush1.msra.mxu0 0.0
        %273 = vmatprep.subr.mxu0 0.0
        %274 = vmatpush1.msra.mxu0 0.0
        %275 = vmatprep.subr.mxu0 0.0
        %276 = vmatpush1.msra.mxu0 0.0
        %277 = vmatprep.subr.mxu0 0.0
        %278 = vmatpush1.msra.mxu0 0.0
        %279 = vmatprep.mubr.f32.mxu0 0.0
        %280 = vmatmul.mubr.f32.gmra.mrb[0].mxu0 %v213
        %v281 = vpop.f32.mrb[0].mxu0
        %v282 = vadd.f32 0.0, %v281
        %v283 = vpop.f32.mrb[0].mxu0
        %284 = vdwg.mxu0
        %285 = vmatprep.subr.mxu0 0.0
        %286 = vmatpush1.msra.mxu0 %v197
        %287 = vmatprep.subr.mxu0 0.0
        %288 = vmatpush1.msra.mxu0 %v198
        %289 = vmatprep.subr.mxu0 0.0
        %290 = vmatpush1.msra.mxu0 0.0
        %291 = vmatprep.subr.mxu0 0.0
        %292 = vmatpush1.msra.mxu0 0.0
        %293 = vmatprep.subr.mxu0 0.0
        %294 = vmatpush1.msra.mxu0 0.0
        %295 = vmatprep.subr.mxu0 0.0
        %296 = vmatpush1.msra.mxu0 0.0
        %297 = vmatprep.subr.mxu0 0.0
        %298 = vmatpush1.msra.mxu0 0.0
        %299 = vmatprep.subr.mxu0 0.0
        %300 = vmatpush1.msra.mxu0 0.0
        %301 = vmatprep.subr.mxu0 0.0
        %302 = vmatpush1.msra.mxu0 0.0
        %303 = vmatprep.subr.mxu0 0.0
        %304 = vmatpush1.msra.mxu0 0.0
        %305 = vmatprep.subr.mxu0 0.0
        %306 = vmatpush1.msra.mxu0 0.0
        %307 = vmatprep.subr.mxu0 0.0
        %308 = vmatpush1.msra.mxu0 0.0
        %309 = vmatprep.subr.mxu0 0.0
        %310 = vmatpush1.msra.mxu0 0.0
        %311 = vmatprep.subr.mxu0 0.0
        %312 = vmatpush1.msra.mxu0 0.0
        %313 = vmatprep.subr.mxu0 0.0
        %314 = vmatpush1.msra.mxu0 0.0
        %315 = vmatprep.subr.mxu0 0.0
        %316 = vmatpush1.msra.mxu0 0.0
        %317 = vmatprep.subr.mxu0 0.0
        %318 = vmatpush1.msra.mxu0 0.0
        %319 = vmatprep.subr.mxu0 0.0
        %320 = vmatpush1.msra.mxu0 0.0
        %321 = vmatprep.subr.mxu0 0.0
        %322 = vmatpush1.msra.mxu0 0.0
        %323 = vmatprep.subr.mxu0 0.0
        %324 = vmatpush1.msra.mxu0 0.0
        %325 = vmatprep.subr.mxu0 0.0
        %326 = vmatpush1.msra.mxu0 0.0
        %327 = vmatprep.subr.mxu0 0.0
        %328 = vmatpush1.msra.mxu0 0.0
        %329 = vmatprep.subr.mxu0 0.0
        %330 = vmatpush1.msra.mxu0 0.0
        %331 = vmatprep.subr.mxu0 0.0
        %332 = vmatpush1.msra.mxu0 0.0
        %333 = vmatprep.subr.mxu0 0.0
        %334 = vmatpush1.msra.mxu0 0.0
        %335 = vmatprep.subr.mxu0 0.0
        %336 = vmatpush1.msra.mxu0 0.0
        %337 = vmatprep.subr.mxu0 0.0
        %338 = vmatpush1.msra.mxu0 0.0
        %339 = vmatprep.subr.mxu0 0.0
        %340 = vmatpush1.msra.mxu0 0.0
        %341 = vmatprep.subr.mxu0 0.0
        %342 = vmatpush1.msra.mxu0 0.0
        %343 = vmatprep.subr.mxu0 0.0
        %344 = vmatpush1.msra.mxu0 0.0
        %345 = vmatprep.subr.mxu0 0.0
        %346 = vmatpush1.msra.mxu0 0.0
        %347 = vmatprep.subr.mxu0 0.0
        %348 = vmatpush1.msra.mxu0 0.0
        %349 = vmatprep.mubr.f32.mxu0 0.0
        %350 = vmatmul.mubr.f32.gmra.mrb[0].mxu0 %v213
        %v351 = vpop.f32.mrb[0].mxu0
        %v352 = vadd.f32 0.0, %v351
        %v353 = vpop.f32.mrb[0].mxu0
        %354 = vdwg.mxu0
        %355 = vmatprep.subr.mxu0 0.0
        %356 = vmatpush1.msra.mxu0 %v199
        %357 = vmatprep.subr.mxu0 0.0
        %358 = vmatpush1.msra.mxu0 %v200
        %359 = vmatprep.subr.mxu0 0.0
        %360 = vmatpush1.msra.mxu0 0.0
        %361 = vmatprep.subr.mxu0 0.0
        %362 = vmatpush1.msra.mxu0 0.0
        %363 = vmatprep.subr.mxu0 0.0
        %364 = vmatpush1.msra.mxu0 0.0
        %365 = vmatprep.subr.mxu0 0.0
        %366 = vmatpush1.msra.mxu0 0.0
        %367 = vmatprep.subr.mxu0 0.0
        %368 = vmatpush1.msra.mxu0 0.0
        %369 = vmatprep.subr.mxu0 0.0
        %370 = vmatpush1.msra.mxu0 0.0
        %371 = vmatprep.subr.mxu0 0.0
        %372 = vmatpush1.msra.mxu0 0.0
        %373 = vmatprep.subr.mxu0 0.0
        %374 = vmatpush1.msra.mxu0 0.0
        %375 = vmatprep.subr.mxu0 0.0
        %376 = vmatpush1.msra.mxu0 0.0
        %377 = vmatprep.subr.mxu0 0.0
        %378 = vmatpush1.msra.mxu0 0.0
        %379 = vmatprep.subr.mxu0 0.0
        %380 = vmatpush1.msra.mxu0 0.0
        %381 = vmatprep.subr.mxu0 0.0
        %382 = vmatpush1.msra.mxu0 0.0
        %383 = vmatprep.subr.mxu0 0.0
        %384 = vmatpush1.msra.mxu0 0.0
        %385 = vmatprep.subr.mxu0 0.0
        %386 = vmatpush1.msra.mxu0 0.0
        %387 = vmatprep.subr.mxu0 0.0
        %388 = vmatpush1.msra.mxu0 0.0
        %389 = vmatprep.subr.mxu0 0.0
        %390 = vmatpush1.msra.mxu0 0.0
        %391 = vmatprep.subr.mxu0 0.0
        %392 = vmatpush1.msra.mxu0 0.0
        %393 = vmatprep.subr.mxu0 0.0
        %394 = vmatpush1.msra.mxu0 0.0
        %395 = vmatprep.subr.mxu0 0.0
        %396 = vmatpush1.msra.mxu0 0.0
        %397 = vmatprep.subr.mxu0 0.0
        %398 = vmatpush1.msra.mxu0 0.0
        %399 = vmatprep.subr.mxu0 0.0
        %400 = vmatpush1.msra.mxu0 0.0
        %401 = vmatprep.subr.mxu0 0.0
        %402 = vmatpush1.msra.mxu0 0.0
        %403 = vmatprep.subr.mxu0 0.0
        %404 = vmatpush1.msra.mxu0 0.0
        %405 = vmatprep.subr.mxu0 0.0
        %406 = vmatpush1.msra.mxu0 0.0
        %407 = vmatprep.subr.mxu0 0.0
        %408 = vmatpush1.msra.mxu0 0.0
        %409 = vmatprep.subr.mxu0 0.0
        %410 = vmatpush1.msra.mxu0 0.0
        %411 = vmatprep.subr.mxu0 0.0
        %412 = vmatpush1.msra.mxu0 0.0
        %413 = vmatprep.subr.mxu0 0.0
        %414 = vmatpush1.msra.mxu0 0.0
        %415 = vmatprep.subr.mxu0 0.0
        %416 = vmatpush1.msra.mxu0 0.0
        %417 = vmatprep.subr.mxu0 0.0
        %418 = vmatpush1.msra.mxu0 0.0
        %419 = vmatprep.mubr.f32.mxu0 0.0
        %420 = vmatmul.mubr.f32.gmra.mrb[0].mxu0 %v213
        %v421 = vpop.f32.mrb[0].mxu0
        %v422 = vadd.f32 0.0, %v421
        %v423 = vpop.f32.mrb[0].mxu0
        %424 = vdwg.mxu0
        %425 = vmatprep.subr.mxu0 0.0
        %426 = vmatpush1.msra.mxu0 %v201
        %427 = vmatprep.subr.mxu0 0.0
        %428 = vmatpush1.msra.mxu0 %v202
        %429 = vmatprep.subr.mxu0 0.0
        %430 = vmatpush1.msra.mxu0 0.0
        %431 = vmatprep.subr.mxu0 0.0
        %432 = vmatpush1.msra.mxu0 0.0
        %433 = vmatprep.subr.mxu0 0.0
        %434 = vmatpush1.msra.mxu0 0.0
        %435 = vmatprep.subr.mxu0 0.0
        %436 = vmatpush1.msra.mxu0 0.0
        %437 = vmatprep.subr.mxu0 0.0
        %438 = vmatpush1.msra.mxu0 0.0
        %439 = vmatprep.subr.mxu0 0.0
        %440 = vmatpush1.msra.mxu0 0.0
        %441 = vmatprep.subr.mxu0 0.0
        %442 = vmatpush1.msra.mxu0 0.0
        %443 = vmatprep.subr.mxu0 0.0
        %444 = vmatpush1.msra.mxu0 0.0
        %445 = vmatprep.subr.mxu0 0.0
        %446 = vmatpush1.msra.mxu0 0.0
        %447 = vmatprep.subr.mxu0 0.0
        %448 = vmatpush1.msra.mxu0 0.0
        %449 = vmatprep.subr.mxu0 0.0
        %450 = vmatpush1.msra.mxu0 0.0
        %451 = vmatprep.subr.mxu0 0.0
        %452 = vmatpush1.msra.mxu0 0.0
        %453 = vmatprep.subr.mxu0 0.0
        %454 = vmatpush1.msra.mxu0 0.0
        %455 = vmatprep.subr.mxu0 0.0
        %456 = vmatpush1.msra.mxu0 0.0
        %457 = vmatprep.subr.mxu0 0.0
        %458 = vmatpush1.msra.mxu0 0.0
        %459 = vmatprep.subr.mxu0 0.0
        %460 = vmatpush1.msra.mxu0 0.0
        %461 = vmatprep.subr.mxu0 0.0
        %462 = vmatpush1.msra.mxu0 0.0
        %463 = vmatprep.subr.mxu0 0.0
        %464 = vmatpush1.msra.mxu0 0.0
        %465 = vmatprep.subr.mxu0 0.0
        %466 = vmatpush1.msra.mxu0 0.0
        %467 = vmatprep.subr.mxu0 0.0
        %468 = vmatpush1.msra.mxu0 0.0
        %469 = vmatprep.subr.mxu0 0.0
        %470 = vmatpush1.msra.mxu0 0.0
        %471 = vmatprep.subr.mxu0 0.0
        %472 = vmatpush1.msra.mxu0 0.0
        %473 = vmatprep.subr.mxu0 0.0
        %474 = vmatpush1.msra.mxu0 0.0
        %475 = vmatprep.subr.mxu0 0.0
        %476 = vmatpush1.msra.mxu0 0.0
        %477 = vmatprep.subr.mxu0 0.0
        %478 = vmatpush1.msra.mxu0 0.0
        %479 = vmatprep.subr.mxu0 0.0
        %480 = vmatpush1.msra.mxu0 0.0
        %481 = vmatprep.subr.mxu0 0.0
        %482 = vmatpush1.msra.mxu0 0.0
        %483 = vmatprep.subr.mxu0 0.0
        %484 = vmatpush1.msra.mxu0 0.0
        %485 = vmatprep.subr.mxu0 0.0
        %486 = vmatpush1.msra.mxu0 0.0
        %487 = vmatprep.subr.mxu0 0.0
        %488 = vmatpush1.msra.mxu0 0.0
        %489 = vmatprep.mubr.f32.mxu0 0.0
        %490 = vmatmul.mubr.f32.gmra.mrb[0].mxu0 %v213
        %v491 = vpop.f32.mrb[0].mxu0
        %v492 = vadd.f32 0.0, %v491
        %v493 = vpop.f32.mrb[0].mxu0
        %494 = vdwg.mxu0
        %v495 = vadd.s32 %v204, 8
        %v496 = vmul.u32 %v206, 2
        %vm497 = vcmp.eq.s32.totalorder %v204, %v496
        %vm498 = vcmp.eq.s32.totalorder %v495, %v496
        %v499 = vsel %vm497, 1, 0
        %v500 = vsel %vm498, 1, 0
        %v501 = vcvt.s32.f32 %v499
        %v502 = vcvt.s32.f32 %v500
        %v504 = vsel %vm211, %v282, 0
        %506 = vmatprep.subr.mxu0 0.0
        %507 = vmatpush1.msra.mxu0 %v501
        %508 = vmatprep.subr.mxu0 0.0
        %509 = vmatpush1.msra.mxu0 %v502
        %510 = vmatprep.subr.mxu0 0.0
        %511 = vmatpush1.msra.mxu0 0.0
        %512 = vmatprep.subr.mxu0 0.0
        %513 = vmatpush1.msra.mxu0 0.0
        %514 = vmatprep.subr.mxu0 0.0
        %515 = vmatpush1.msra.mxu0 0.0
        %516 = vmatprep.subr.mxu0 0.0
        %517 = vmatpush1.msra.mxu0 0.0
        %518 = vmatprep.subr.mxu0 0.0
        %519 = vmatpush1.msra.mxu0 0.0
        %520 = vmatprep.subr.mxu0 0.0
        %521 = vmatpush1.msra.mxu0 0.0
        %522 = vmatprep.subr.mxu0 0.0
        %523 = vmatpush1.msra.mxu0 0.0
        %524 = vmatprep.subr.mxu0 0.0
        %525 = vmatpush1.msra.mxu0 0.0
        %526 = vmatprep.subr.mxu0 0.0
        %527 = vmatpush1.msra.mxu0 0.0
        %528 = vmatprep.subr.mxu0 0.0
        %529 = vmatpush1.msra.mxu0 0.0
        %530 = vmatprep.subr.mxu0 0.0
        %531 = vmatpush1.msra.mxu0 0.0
        %532 = vmatprep.subr.mxu0 0.0
        %533 = vmatpush1.msra.mxu0 0.0
        %534 = vmatprep.subr.mxu0 0.0
        %535 = vmatpush1.msra.mxu0 0.0
        %536 = vmatprep.subr.mxu0 0.0
        %537 = vmatpush1.msra.mxu0 0.0
        %538 = vmatprep.subr.mxu0 0.0
        %539 = vmatpush1.msra.mxu0 0.0
        %540 = vmatprep.subr.mxu0 0.0
        %541 = vmatpush1.msra.mxu0 0.0
        %542 = vmatprep.subr.mxu0 0.0
        %543 = vmatpush1.msra.mxu0 0.0
        %544 = vmatprep.subr.mxu0 0.0
        %545 = vmatpush1.msra.mxu0 0.0
        %546 = vmatprep.subr.mxu0 0.0
        %547 = vmatpush1.msra.mxu0 0.0
        %548 = vmatprep.subr.mxu0 0.0
        %549 = vmatpush1.msra.mxu0 0.0
        %550 = vmatprep.subr.mxu0 0.0
        %551 = vmatpush1.msra.mxu0 0.0
        %552 = vmatprep.subr.mxu0 0.0
        %553 = vmatpush1.msra.mxu0 0.0
        %554 = vmatprep.subr.mxu0 0.0
        %555 = vmatpush1.msra.mxu0 0.0
        %556 = vmatprep.subr.mxu0 0.0
        %557 = vmatpush1.msra.mxu0 0.0
        %558 = vmatprep.subr.mxu0 0.0
        %559 = vmatpush1.msra.mxu0 0.0
        %560 = vmatprep.subr.mxu0 0.0
        %561 = vmatpush1.msra.mxu0 0.0
        %562 = vmatprep.subr.mxu0 0.0
        %563 = vmatpush1.msra.mxu0 0.0
        %564 = vmatprep.subr.mxu0 0.0
        %565 = vmatpush1.msra.mxu0 0.0
        %566 = vmatprep.subr.mxu0 0.0
        %567 = vmatpush1.msra.mxu0 0.0
        %568 = vmatprep.subr.mxu0 0.0
        %569 = vmatpush1.msra.mxu0 0.0
        %570 = vmatprep.mubr.f32.mxu0 0.0
        %571 = vmatmul.mubr.f32.gmra.mrb[0].mxu0 %v504
        %v572 = vpop.f32.mrb[0].mxu0
        %v573 = vadd.f32 0.0, %v572
        %v574 = vpop.f32.mrb[0].mxu0
        %575 = vdwg.mxu0
        %v577 = vsel %vm211, %v352, 0
        %579 = vmatprep.subr.mxu0 0.0
        %580 = vmatpush1.msra.mxu0 %v501
        %581 = vmatprep.subr.mxu0 0.0
        %582 = vmatpush1.msra.mxu0 %v502
        %583 = vmatprep.subr.mxu0 0.0
        %584 = vmatpush1.msra.mxu0 0.0
        %585 = vmatprep.subr.mxu0 0.0
        %586 = vmatpush1.msra.mxu0 0.0
        %587 = vmatprep.subr.mxu0 0.0
        %588 = vmatpush1.msra.mxu0 0.0
        %589 = vmatprep.subr.mxu0 0.0
        %590 = vmatpush1.msra.mxu0 0.0
        %591 = vmatprep.subr.mxu0 0.0
        %592 = vmatpush1.msra.mxu0 0.0
        %593 = vmatprep.subr.mxu0 0.0
        %594 = vmatpush1.msra.mxu0 0.0
        %595 = vmatprep.subr.mxu0 0.0
        %596 = vmatpush1.msra.mxu0 0.0
        %597 = vmatprep.subr.mxu0 0.0
        %598 = vmatpush1.msra.mxu0 0.0
        %599 = vmatprep.subr.mxu0 0.0
        %600 = vmatpush1.msra.mxu0 0.0
        %601 = vmatprep.subr.mxu0 0.0
        %602 = vmatpush1.msra.mxu0 0.0
        %603 = vmatprep.subr.mxu0 0.0
        %604 = vmatpush1.msra.mxu0 0.0
        %605 = vmatprep.subr.mxu0 0.0
        %606 = vmatpush1.msra.mxu0 0.0
        %607 = vmatprep.subr.mxu0 0.0
        %608 = vmatpush1.msra.mxu0 0.0
        %609 = vmatprep.subr.mxu0 0.0
        %610 = vmatpush1.msra.mxu0 0.0
        %611 = vmatprep.subr.mxu0 0.0
        %612 = vmatpush1.msra.mxu0 0.0
        %613 = vmatprep.subr.mxu0 0.0
        %614 = vmatpush1.msra.mxu0 0.0
        %615 = vmatprep.subr.mxu0 0.0
        %616 = vmatpush1.msra.mxu0 0.0
        %617 = vmatprep.subr.mxu0 0.0
        %618 = vmatpush1.msra.mxu0 0.0
        %619 = vmatprep.subr.mxu0 0.0
        %620 = vmatpush1.msra.mxu0 0.0
        %621 = vmatprep.subr.mxu0 0.0
        %622 = vmatpush1.msra.mxu0 0.0
        %623 = vmatprep.subr.mxu0 0.0
        %624 = vmatpush1.msra.mxu0 0.0
        %625 = vmatprep.subr.mxu0 0.0
        %626 = vmatpush1.msra.mxu0 0.0
        %627 = vmatprep.subr.mxu0 0.0
        %628 = vmatpush1.msra.mxu0 0.0
        %629 = vmatprep.subr.mxu0 0.0
        %630 = vmatpush1.msra.mxu0 0.0
        %631 = vmatprep.subr.mxu0 0.0
        %632 = vmatpush1.msra.mxu0 0.0
        %633 = vmatprep.subr.mxu0 0.0
        %634 = vmatpush1.msra.mxu0 0.0
        %635 = vmatprep.subr.mxu0 0.0
        %636 = vmatpush1.msra.mxu0 0.0
        %637 = vmatprep.subr.mxu0 0.0
        %638 = vmatpush1.msra.mxu0 0.0
        %639 = vmatprep.subr.mxu0 0.0
        %640 = vmatpush1.msra.mxu0 0.0
        %641 = vmatprep.subr.mxu0 0.0
        %642 = vmatpush1.msra.mxu0 0.0
        %643 = vmatprep.mubr.f32.mxu0 0.0
        %644 = vmatmul.mubr.f32.gmra.mrb[0].mxu0 %v577
        %v645 = vpop.f32.mrb[0].mxu0
        %v646 = vadd.f32 0.0, %v645
        %v647 = vpop.f32.mrb[0].mxu0
        %648 = vdwg.mxu0
        %v650 = vsel %vm211, %v422, 0
        %652 = vmatprep.subr.mxu0 0.0
        %653 = vmatpush1.msra.mxu0 %v501
        %654 = vmatprep.subr.mxu0 0.0
        %655 = vmatpush1.msra.mxu0 %v502
        %656 = vmatprep.subr.mxu0 0.0
        %657 = vmatpush1.msra.mxu0 0.0
        %658 = vmatprep.subr.mxu0 0.0
        %659 = vmatpush1.msra.mxu0 0.0
        %660 = vmatprep.subr.mxu0 0.0
        %661 = vmatpush1.msra.mxu0 0.0
        %662 = vmatprep.subr.mxu0 0.0
        %663 = vmatpush1.msra.mxu0 0.0
        %664 = vmatprep.subr.mxu0 0.0
        %665 = vmatpush1.msra.mxu0 0.0
        %666 = vmatprep.subr.mxu0 0.0
        %667 = vmatpush1.msra.mxu0 0.0
        %668 = vmatprep.subr.mxu0 0.0
        %669 = vmatpush1.msra.mxu0 0.0
        %670 = vmatprep.subr.mxu0 0.0
        %671 = vmatpush1.msra.mxu0 0.0
        %672 = vmatprep.subr.mxu0 0.0
        %673 = vmatpush1.msra.mxu0 0.0
        %674 = vmatprep.subr.mxu0 0.0
        %675 = vmatpush1.msra.mxu0 0.0
        %676 = vmatprep.subr.mxu0 0.0
        %677 = vmatpush1.msra.mxu0 0.0
        %678 = vmatprep.subr.mxu0 0.0
        %679 = vmatpush1.msra.mxu0 0.0
        %680 = vmatprep.subr.mxu0 0.0
        %681 = vmatpush1.msra.mxu0 0.0
        %682 = vmatprep.subr.mxu0 0.0
        %683 = vmatpush1.msra.mxu0 0.0
        %684 = vmatprep.subr.mxu0 0.0
        %685 = vmatpush1.msra.mxu0 0.0
        %686 = vmatprep.subr.mxu0 0.0
        %687 = vmatpush1.msra.mxu0 0.0
        %688 = vmatprep.subr.mxu0 0.0
        %689 = vmatpush1.msra.mxu0 0.0
        %690 = vmatprep.subr.mxu0 0.0
        %691 = vmatpush1.msra.mxu0 0.0
        %692 = vmatprep.subr.mxu0 0.0
        %693 = vmatpush1.msra.mxu0 0.0
        %694 = vmatprep.subr.mxu0 0.0
        %695 = vmatpush1.msra.mxu0 0.0
        %696 = vmatprep.subr.mxu0 0.0
        %697 = vmatpush1.msra.mxu0 0.0
        %698 = vmatprep.subr.mxu0 0.0
        %699 = vmatpush1.msra.mxu0 0.0
        %700 = vmatprep.subr.mxu0 0.0
        %701 = vmatpush1.msra.mxu0 0.0
        %702 = vmatprep.subr.mxu0 0.0
        %703 = vmatpush1.msra.mxu0 0.0
        %704 = vmatprep.subr.mxu0 0.0
        %705 = vmatpush1.msra.mxu0 0.0
        %706 = vmatprep.subr.mxu0 0.0
        %707 = vmatpush1.msra.mxu0 0.0
        %708 = vmatprep.subr.mxu0 0.0
        %709 = vmatpush1.msra.mxu0 0.0
        %710 = vmatprep.subr.mxu0 0.0
        %711 = vmatpush1.msra.mxu0 0.0
        %712 = vmatprep.subr.mxu0 0.0
        %713 = vmatpush1.msra.mxu0 0.0
        %714 = vmatprep.subr.mxu0 0.0
        %715 = vmatpush1.msra.mxu0 0.0
        %716 = vmatprep.mubr.f32.mxu0 0.0
        %717 = vmatmul.mubr.f32.gmra.mrb[0].mxu0 %v650
        %v718 = vpop.f32.mrb[0].mxu0
        %v719 = vadd.f32 0.0, %v718
        %v720 = vpop.f32.mrb[0].mxu0
        %721 = vdwg.mxu0
        %v723 = vsel %vm211, %v492, 0
        %725 = vmatprep.subr.mxu0 0.0
        %726 = vmatpush1.msra.mxu0 %v501
        %727 = vmatprep.subr.mxu0 0.0
        %728 = vmatpush1.msra.mxu0 %v502
        %729 = vmatprep.subr.mxu0 0.0
        %730 = vmatpush1.msra.mxu0 0.0
        %731 = vmatprep.subr.mxu0 0.0
        %732 = vmatpush1.msra.mxu0 0.0
        %733 = vmatprep.subr.mxu0 0.0
        %734 = vmatpush1.msra.mxu0 0.0
        %735 = vmatprep.subr.mxu0 0.0
        %736 = vmatpush1.msra.mxu0 0.0
        %737 = vmatprep.subr.mxu0 0.0
        %738 = vmatpush1.msra.mxu0 0.0
        %739 = vmatprep.subr.mxu0 0.0
        %740 = vmatpush1.msra.mxu0 0.0
        %741 = vmatprep.subr.mxu0 0.0
        %742 = vmatpush1.msra.mxu0 0.0
        %743 = vmatprep.subr.mxu0 0.0
        %744 = vmatpush1.msra.mxu0 0.0
        %745 = vmatprep.subr.mxu0 0.0
        %746 = vmatpush1.msra.mxu0 0.0
        %747 = vmatprep.subr.mxu0 0.0
        %748 = vmatpush1.msra.mxu0 0.0
        %749 = vmatprep.subr.mxu0 0.0
        %750 = vmatpush1.msra.mxu0 0.0
        %751 = vmatprep.subr.mxu0 0.0
        %752 = vmatpush1.msra.mxu0 0.0
        %753 = vmatprep.subr.mxu0 0.0
        %754 = vmatpush1.msra.mxu0 0.0
        %755 = vmatprep.subr.mxu0 0.0
        %756 = vmatpush1.msra.mxu0 0.0
        %757 = vmatprep.subr.mxu0 0.0
        %758 = vmatpush1.msra.mxu0 0.0
        %759 = vmatprep.subr.mxu0 0.0
        %760 = vmatpush1.msra.mxu0 0.0
        %761 = vmatprep.subr.mxu0 0.0
        %762 = vmatpush1.msra.mxu0 0.0
        %763 = vmatprep.subr.mxu0 0.0
        %764 = vmatpush1.msra.mxu0 0.0
        %765 = vmatprep.subr.mxu0 0.0
        %766 = vmatpush1.msra.mxu0 0.0
        %767 = vmatprep.subr.mxu0 0.0
        %768 = vmatpush1.msra.mxu0 0.0
        %769 = vmatprep.subr.mxu0 0.0
        %770 = vmatpush1.msra.mxu0 0.0
        %771 = vmatprep.subr.mxu0 0.0
        %772 = vmatpush1.msra.mxu0 0.0
        %773 = vmatprep.subr.mxu0 0.0
        %774 = vmatpush1.msra.mxu0 0.0
        %775 = vmatprep.subr.mxu0 0.0
        %776 = vmatpush1.msra.mxu0 0.0
        %777 = vmatprep.subr.mxu0 0.0
        %778 = vmatpush1.msra.mxu0 0.0
        %779 = vmatprep.subr.mxu0 0.0
        %780 = vmatpush1.msra.mxu0 0.0
        %781 = vmatprep.subr.mxu0 0.0
        %782 = vmatpush1.msra.mxu0 0.0
        %783 = vmatprep.subr.mxu0 0.0
        %784 = vmatpush1.msra.mxu0 0.0
        %785 = vmatprep.subr.mxu0 0.0
        %786 = vmatpush1.msra.mxu0 0.0
        %787 = vmatprep.subr.mxu0 0.0
        %788 = vmatpush1.msra.mxu0 0.0
        %789 = vmatprep.mubr.f32.mxu0 0.0
        %790 = vmatmul.mubr.f32.gmra.mrb[0].mxu0 %v723
        %v791 = vpop.f32.mrb[0].mxu0
        %v792 = vadd.f32 0.0, %v791
        %v793 = vpop.f32.mrb[0].mxu0
        %794 = vdwg.mxu0
        %s795 = sld [smem:[#allocation6]]
        %v796 = vstv %s795
        %v797 = vmul.f32 %v573, %v796
        %s798 = sld [smem:[#allocation6 + $0x1]]
        %v799 = vstv %s798
        %v800 = vmul.f32 %v646, %v799
        %v801 = vadd.f32 %v797, %v800
        %s802 = sld [smem:[#allocation6 + $0x2]]
        %v803 = vstv %s802
        %v804 = vmul.f32 %v719, %v803
        %v805 = vadd.f32 %v801, %v804
        %s806 = sld [smem:[#allocation6 + $0x3]]
        %v807 = vstv %s806
        %v808 = vmul.f32 %v792, %v807
        %v809 = vadd.f32 %v805, %v808
        %s810 = sld [smem:[#allocation6 + $0x80]]
        %v811 = vstv %s810
        %v812 = vmul.f32 %v573, %v811
        %s813 = sld [smem:[#allocation6 + $0x81]]
        %v814 = vstv %s813
        %v815 = vmul.f32 %v646, %v814
        %v816 = vadd.f32 %v812, %v815
        %s817 = sld [smem:[#allocation6 + $0x82]]
        %v818 = vstv %s817
        %v819 = vmul.f32 %v719, %v818
        %v820 = vadd.f32 %v816, %v819
        %s821 = sld [smem:[#allocation6 + $0x83]]
        %v822 = vstv %s821
        %v823 = vmul.f32 %v792, %v822
        %v824 = vadd.f32 %v820, %v823
        %s825 = sld [smem:[#allocation6 + $0x100]]
        %v826 = vstv %s825
        %v827 = vmul.f32 %v573, %v826
        %s828 = sld [smem:[#allocation6 + $0x101]]
        %v829 = vstv %s828
        %v830 = vmul.f32 %v646, %v829
        %v831 = vadd.f32 %v827, %v830
        %s832 = sld [smem:[#allocation6 + $0x102]]
        %v833 = vstv %s832
        %v834 = vmul.f32 %v719, %v833
        %v835 = vadd.f32 %v831, %v834
        %s836 = sld [smem:[#allocation6 + $0x103]]
        %v837 = vstv %s836
        %v838 = vmul.f32 %v792, %v837
        %v839 = vadd.f32 %v835, %v838
        %s840 = sld [smem:[#allocation6 + $0x180]]
        %v841 = vstv %s840
        %v842 = vmul.f32 %v573, %v841
        %s843 = sld [smem:[#allocation6 + $0x181]]
        %v844 = vstv %s843
        %v845 = vmul.f32 %v646, %v844
        %v846 = vadd.f32 %v842, %v845
        %s847 = sld [smem:[#allocation6 + $0x182]]
        %v848 = vstv %s847
        %v849 = vmul.f32 %v719, %v848
        %v850 = vadd.f32 %v846, %v849
        %s851 = sld [smem:[#allocation6 + $0x183]]
        %v852 = vstv %s851
        %v853 = vmul.f32 %v792, %v852
        %v854 = vadd.f32 %v850, %v853
        %s855 = sld [smem:[#allocation6 + $0x200]]
        %v856 = vstv %s855
        %v857 = vmul.f32 %v573, %v856
        %s858 = sld [smem:[#allocation6 + $0x201]]
        %v859 = vstv %s858
        %v860 = vmul.f32 %v646, %v859
        %v861 = vadd.f32 %v857, %v860
        %s862 = sld [smem:[#allocation6 + $0x202]]
        %v863 = vstv %s862
        %v864 = vmul.f32 %v719, %v863
        %v865 = vadd.f32 %v861, %v864
        %s866 = sld [smem:[#allocation6 + $0x203]]
        %v867 = vstv %s866
        %v868 = vmul.f32 %v792, %v867
        %v869 = vadd.f32 %v865, %v868
        %s870 = sld [smem:[#allocation6 + $0x280]]
        %v871 = vstv %s870
        %v872 = vmul.f32 %v573, %v871
        %s873 = sld [smem:[#allocation6 + $0x281]]
        %v874 = vstv %s873
        %v875 = vmul.f32 %v646, %v874
        %v876 = vadd.f32 %v872, %v875
        %s877 = sld [smem:[#allocation6 + $0x282]]
        %v878 = vstv %s877
        %v879 = vmul.f32 %v719, %v878
        %v880 = vadd.f32 %v876, %v879
        %s881 = sld [smem:[#allocation6 + $0x283]]
        %v882 = vstv %s881
        %v883 = vmul.f32 %v792, %v882
        %v884 = vadd.f32 %v880, %v883
        %s885 = sld [smem:[#allocation6 + $0x300]]
        %v886 = vstv %s885
        %v887 = vmul.f32 %v573, %v886
        %s888 = sld [smem:[#allocation6 + $0x301]]
        %v889 = vstv %s888
        %v890 = vmul.f32 %v646, %v889
        %v891 = vadd.f32 %v887, %v890
        %s892 = sld [smem:[#allocation6 + $0x302]]
        %v893 = vstv %s892
        %v894 = vmul.f32 %v719, %v893
        %v895 = vadd.f32 %v891, %v894
        %s896 = sld [smem:[#allocation6 + $0x303]]
        %v897 = vstv %s896
        %v898 = vmul.f32 %v792, %v897
        %v899 = vadd.f32 %v895, %v898
        %s900 = sld [smem:[#allocation6 + $0x380]]
        %v901 = vstv %s900
        %v902 = vmul.f32 %v573, %v901
        %s903 = sld [smem:[#allocation6 + $0x381]]
        %v904 = vstv %s903
        %v905 = vmul.f32 %v646, %v904
        %v906 = vadd.f32 %v902, %v905
        %s907 = sld [smem:[#allocation6 + $0x382]]
        %v908 = vstv %s907
        %v909 = vmul.f32 %v719, %v908
        %v910 = vadd.f32 %v906, %v909
        %s911 = sld [smem:[#allocation6 + $0x383]]
        %v912 = vstv %s911
        %v913 = vmul.f32 %v792, %v912
        %v914 = vadd.f32 %v910, %v913
        %vm915 = vcmask 64512
        %916 = vst.msk [vmem:[%s193] sm:$0xff] %vm915, %v809
        %917 = vst.msk [vmem:[%s193 + $0x8] sm:$0xff] %vm915, %v824
        %918 = vst.msk [vmem:[%s193 + $0x10] sm:$0xff] %vm915, %v839
        %919 = vst.msk [vmem:[%s193 + $0x18] sm:$0xff] %vm915, %v854
        %920 = vst.msk [vmem:[%s193 + $0x20] sm:$0xff] %vm915, %v869
        %921 = vst.msk [vmem:[%s193 + $0x28] sm:$0xff] %vm915, %v884
        %922 = vst.msk [vmem:[%s193 + $0x30] sm:$0xff] %vm915, %v899
        %923 = vst.msk [vmem:[%s193 + $0x38] sm:$0xff] %vm915, %v914
        %s924 = sand.u32 %s91, 1
        %s925 = scalar_lea.sflag [#allocation4], %s924
        %s926 = sand.u32 %s91, 1
        %s927 = smul.addr %s926, 64
        %s928 = scalar_lea.vmem [#allocation7], %s927
        // Predicated region
        $region37: #{tpu_custom_call.1} parent=27 // pred_check
          %p929 = pneg %p101
        $region38: #{tpu_custom_call.1} parent=27 // pred_check_branch
          %931 = sbr.rel (%p929) target = $region40
        $region39: #{tpu_custom_call.1} parent=27 // pred_region
          %s933 = ssub.s32 1024, 1024
          %934 = vsyncadd %s925, %s933
          %s935 = smul.addr %s24, 8
          %s936 = sadd.s32 %s25, %s935
          %s937 = smul.addr %s936, 128
          %s938 = scalar_lea.hbm %s2, %s937
          %s939 = sshll.u32 %s928, 4
          %s940 = int_to_ptr.vmem [resolvable:$true] %s939
          %945 = dma.vmem_to_hbm [thread:$0]  %s940, 1024, %s938, %s925, 128, 128, 8
        $region40: #{tpu_custom_call.1} parent=27 // pred_fallthru
          _
      $region28: #{tpu_custom_call.1} parent=5 // pred_fallthru
        _
      %p946 = scmp.le.s32.totalorder 2, %s15
      // Predicated region
      $region41: #{tpu_custom_call.1} parent=5 // pred_check
        %p947 = pneg %p946
      $region42: #{tpu_custom_call.1} parent=5 // pred_check_branch
        %949 = sbr.rel (%p947) target = $region44
      $region43: #{tpu_custom_call.1} parent=5 // pred_region
        %s950 = ssub.s32 %s15, 2
        // Predicated region
        $region45: #{tpu_custom_call.1} parent=43 // pred_check
          %p951 = pneg %p107
        $region46: #{tpu_custom_call.1} parent=43 // pred_check_branch
          %953 = sbr.rel (%p951) target = $region48
        $region47: #{tpu_custom_call.1} parent=43 // pred_region
          %s954 = sand.u32 %s92, 1
          %s955 = scalar_lea.sflag [#allocation4], %s954
          %s956 = sand.u32 %s92, 1
          %s957 = smul.addr %s956, 64
          %s958 = scalar_lea.vmem [#allocation7], %s957
          %959 = dma.done %s955, 1024
        $region48: #{tpu_custom_call.1} parent=43 // pred_fallthru
          _
      $region44: #{tpu_custom_call.1} parent=5 // pred_fallthru
        _
    $region6: #{tpu_custom_call.1} parent=1 // loop_footer
      %s19 = sadd.s32 1, %s15
    $region7: #{tpu_custom_call.1} parent=1 // loop_footer_branch
      %14 = sbr.rel target = $region3
    $region8: #{tpu_custom_call.1} parent=1 // loop_exit
      _
    %960 = vsyncpa [#allocation3], 1
    %s961 = scalar_lea.sflag [#allocation3], 1
    %962 = vsyncpa %s961, 1
    %963 = vsyncpa [#allocation4], 1
    %s964 = scalar_lea.sflag [#allocation4], 1
    %965 = vsyncpa %s964, 1
    %966 = vsyncpa [#allocation5], 1
    %s967 = scalar_lea.sflag [#allocation5], 1
    %968 = vsyncpa %s967, 1

</llo_original>
